<compile_context>
chip_gen: v5e
topology: v5e:2x2
jax: 0.10.0
libtpu: 0.0.40
codegen_flags: <defaults>
</compile_context>

<pallas_src>
import jax
import jax.numpy as jnp
from jax import lax
from jax.experimental import pallas as pl
from jax.experimental.pallas import tpu as pltpu


def depth2normal_kernel(x_ref, halo_ref, o_ref):
    # x_ref:    (1, 3, TH, W)   row tile of the input
    # halo_ref: (1, 1, SUB, W)  packed seam rows: rows 0..2 = row just above the
    #                           tile (per channel), rows SUB//2.. = row just below;
    #                           zero rows at the true image top/bottom.
    # o_ref:    (1, 3, TH, W)
    _, C, TH, W = x_ref.shape
    half = halo_ref.shape[2] // 2
    zero = jnp.zeros((), x_ref.dtype)

    # Small border masks, broadcast inside jnp.where (not full-slab iotas).
    w_ids = lax.broadcasted_iota(jnp.int32, (1, W), 1)
    h_ids = lax.broadcasted_iota(jnp.int32, (TH, 1), 0)
    w_first, w_last = w_ids == 0, w_ids == (W - 1)
    h_first, h_last = h_ids == 0, h_ids == (TH - 1)

    # Per-channel planes keep the peak number of live (TH, W) VMEM temporaries
    # to ~3 tile-equivalents, which lets us afford bigger row tiles.
    dzdx = []
    dzdy = []
    for c in range(3):                      # static unroll (C == 3)
        xc = x_ref[0, c]                    # (TH, W)
        # dzdx[h, w] = x[h, w+1] - x[h, w-1], zero padding at the W borders.
        dzdx.append(jnp.where(w_last, zero, jnp.roll(xc, -1, axis=1))
                    - jnp.where(w_first, zero, jnp.roll(xc, 1, axis=1)))
        # dzdy[h, w] = x[h+1, w] - x[h-1, w]; halo rows provide seam/border data.
        top_c = halo_ref[0, 0, pl.ds(c, 1), :]          # (1, W) row above the tile
        bot_c = halo_ref[0, 0, pl.ds(half + c, 1), :]   # (1, W) row below the tile
        dzdy.append(jnp.where(h_last, bot_c, jnp.roll(xc, -1, axis=0))
                    - jnp.where(h_first, top_c, jnp.roll(xc, 1, axis=0)))

    a0, a1, a2 = dzdx
    b0, b1, b2 = dzdy
    # normal = -(dzdx x dzdy) along the channel axis.
    o_ref[0, 0] = a2 * b1 - a1 * b2
    o_ref[0, 1] = a0 * b2 - a2 * b0
    o_ref[0, 2] = a1 * b0 - a0 * b1


def _sublane_multiple(dtype):
    # Native sublane packing: 8 rows for 4-byte, 16 for 2-byte, 32 for 1-byte dtypes.
    return max(8, 32 // jnp.dtype(dtype).itemsize)


def _default_vmem_limit_bytes():
    kind = ""
    try:
        kind = jax.devices()[0].device_kind.lower()
    except Exception:
        pass
    if "v6" in kind:
        return 96 * 1024 * 1024     # 128 MiB physical VMEM -> ~10 MiB tiles
    if "v5" in kind:
        return 64 * 1024 * 1024     # 128 MiB physical VMEM, slower HBM -> ~6 MiB tiles
    return 48 * 1024 * 1024         # v7x (64 MiB physical per TC) / unknown: conservative


def _choose_tile_rows(H, W, dtype, target_tile_bytes, force_multi_tile):
    """Pick TH (multiple of the dtype's sublane packing) and the padded H."""
    sub = _sublane_multiple(dtype)
    itemsize = jnp.dtype(dtype).itemsize
    bytes_per_row = 3 * W * itemsize
    target = max(sub, (int(target_tile_bytes // bytes_per_row) // sub) * sub)
    if force_multi_tile and H >= 2 * sub:
        # B == 1: ensure >= 2 row tiles so both v7x TensorCores get work.
        target = min(target, ((H // 2) // sub) * sub)
    target = max(target, sub)

    h_min = int(pl.cdiv(H, sub)) * sub
    if target >= h_min:
        return h_min, h_min                       # whole (sublane-rounded) image, one tile
    # Prefer a divisor of H (avoids an extra padding copy) near the target size.
    t = target
    while t >= sub:
        if H % t == 0:
            if 2 * t >= target:
                return t, H
            break
        t -= sub
    # No good divisor: pad H up to a multiple of the target tile height.
    return target, int(pl.cdiv(H, target)) * target


def _build_halo(x, TH, halo_rows):
    """Packed seam rows, one sublane-aligned DMA per grid step.

    Returns (B, nT, halo_rows, W): rows 0..2 hold x[t*TH - 1] per channel (zeros
    at the image top), rows halo_rows//2.. hold x[(t+1)*TH] (zeros at the bottom)."""
    B, C, H, W = x.shape
    nT = H // TH
    xr = x.reshape(B, C, nT, TH, W)
    z = jnp.zeros((B, C, 1, W), x.dtype)
    if nT > 1:
        lasts = xr[:, :, : nT - 1, TH - 1, :]     # last row of tiles 0..nT-2
        firsts = xr[:, :, 1:, 0, :]               # first row of tiles 1..nT-1
        top = jnp.concatenate([z, lasts], axis=2)    # row above tile t
        bot = jnp.concatenate([firsts, z], axis=2)   # row below tile t
    else:
        top, bot = z, z
    top = jnp.transpose(top, (0, 2, 1, 3))        # (B, nT, C, W)
    bot = jnp.transpose(bot, (0, 2, 1, 3))
    zpad = jnp.zeros((B, nT, halo_rows // 2 - C, W), x.dtype)
    return jnp.concatenate([top, zpad, bot, zpad], axis=2)


def depth2normal(x, *, tile_rows=None, target_tile_bytes=None, vmem_limit_bytes=None):
    B, C, H, W = x.shape
    assert C == 3, "torch.cross along dim=1 requires C == 3"
    dtype = x.dtype
    sub = _sublane_multiple(dtype)

    if vmem_limit_bytes is None:
        vmem_limit_bytes = _default_vmem_limit_bytes()
    if target_tile_bytes is None:
        # HBM-bound kernel: live VMEM ~ 2x(in) + 2x(out) double buffers + ~3 tiles of
        # in-kernel temporaries -> budget the tile at ~1/10 of the VMEM limit.
        target_tile_bytes = vmem_limit_bytes // 10

    # Lane-dense stores: pad W up to a multiple of 128 (result sliced back).
    W_p = W if W % 128 == 0 else int(pl.cdiv(W, 128)) * 128

    if tile_rows is None:
        TH, H_p = _choose_tile_rows(H, W_p, dtype, target_tile_bytes,
                                    force_multi_tile=(B == 1))
    else:
        assert tile_rows % sub == 0, f"tile_rows must be a multiple of {sub}"
        TH = tile_rows
        H_p = int(pl.cdiv(H, TH)) * TH

    x_p = x
    if (H_p, W_p) != (H, W):
        # Zero padding on the bottom/right reproduces conv2d's zero padding for the
        # last real row/column; padded outputs are sliced off below.
        x_p = jnp.pad(x, ((0, 0), (0, 0), (0, H_p - H), (0, W_p - W)))

    nT = H_p // TH
    halo = _build_halo(x_p, TH, sub)
    # TODO(synk): the packed halo array could be removed entirely by reading the two
    # seam rows straight from x with pl.Element-indexed BlockSpecs; kept as a single
    # sublane-aligned per-step DMA here for lowering robustness.

    out = pl.pallas_call(
        depth2normal_kernel,
        out_shape=jax.ShapeDtypeStruct((B, C, H_p, W_p), dtype),
        grid=(B, nT),
        in_specs=[
            pl.BlockSpec((1, C, TH, W_p), lambda b, t: (b, 0, t, 0)),
            pl.BlockSpec((1, 1, sub, W_p), lambda b, t: (b, t, 0, 0)),
        ],
        out_specs=pl.BlockSpec((1, C, TH, W_p), lambda b, t: (b, 0, t, 0)),
        compiler_params=pltpu.CompilerParams(
            # Both axes independent: v7x megacore can shard row tiles even at B == 1.
            dimension_semantics=("parallel", "parallel"),
            vmem_limit_bytes=vmem_limit_bytes,
        ),
    )(x_p, halo)

    if (H_p, W_p) != (H, W):
        out = out[:, :, :H, :W]
    return out


def depth2normal_ref(x):
    # Pure-JAX reference mirroring F.conv2d(padding=1) + (-torch.cross(dim=1)).
    xp = jnp.pad(x, ((0, 0), (0, 0), (0, 0), (1, 1)))
    dzdx = xp[..., 2:] - xp[..., :-2]
    yp = jnp.pad(x, ((0, 0), (0, 0), (1, 1), (0, 0)))
    dzdy = yp[:, :, 2:, :] - yp[:, :, :-2, :]
    return -jnp.cross(dzdx, dzdy, axis=1)


if __name__ == "__main__":
    key = jax.random.PRNGKey(0)
    B, C, H, W = 2, 3, 16, 16
    x = jax.random.normal(key, (B, C, H, W), dtype=jnp.float32)
    ref = depth2normal_ref(x)

    # Default path (auto tile size; W padded to 128 for lane-dense stores).
    out = jax.block_until_ready(depth2normal(x))
    assert out.shape == (B, C, H, W)
    assert jnp.allclose(out, ref, atol=1e-5, rtol=1e-5), "mismatch (default)"

    # Forced multi-row-tile path: exercises the packed halo seams.
    out_tiled = jax.block_until_ready(depth2normal(x, tile_rows=8))
    assert jnp.allclose(out_tiled, ref, atol=1e-5, rtol=1e-5), "mismatch (tiled)"

    # B == 1 with awkward H: exercises the TH <= H/2 cap and the H-padding fallback.
    x1 = jax.random.normal(jax.random.PRNGKey(1), (1, 3, 20, 16), dtype=jnp.float32)
    out1 = jax.block_until_ready(depth2normal(x1))
    assert jnp.allclose(out1, depth2normal_ref(x1), atol=1e-5, rtol=1e-5), "mismatch (B=1/pad)"

    print("KERNEL_OK")
</pallas_src>

<mosaic_0001>
module attributes {stable_mosaic.version = 11 : i64} {
  func.func @depth2normal_kernel(%arg0: i32, %arg1: i32, %arg2: memref<1x3x16x128xf32, #tpu.memory_space<vmem>>, %arg3: memref<1x1x8x128xf32, #tpu.memory_space<vmem>>, %arg4: memref<1x3x16x128xf32, #tpu.memory_space<vmem>>) attributes {dimension_semantics = [#tpu.dimension_semantics<parallel>, #tpu.dimension_semantics<parallel>], iteration_bounds = array<i64: 2, 1>, scalar_prefetch = 0 : i64, scratch_operands = 0 : i64, tpu.core_type = #tpu.core_type<tc>, window_params = [{transform_indices = @transform_0, window_bounds = array<i64: 1, 3, 16, 128>}, {transform_indices = @transform_1, window_bounds = array<i64: 1, 1, 8, 128>}, {transform_indices = @transform_2, window_bounds = array<i64: 1, 3, 16, 128>}]} {
    %0 = tpu.iota {dimensions = array<i32: 1>} : vector<1x128xi32>
    %1 = tpu.iota {dimensions = array<i32: 0>} : vector<16x1xi32>
    %c0_i32 = arith.constant 0 : i32
    %2 = vector.broadcast %c0_i32 : i32 to vector<1x128xi32>
    %3 = arith.cmpi eq, %0, %2 : vector<1x128xi32>
    %c127_i32 = arith.constant 127 : i32
    %4 = vector.broadcast %c127_i32 : i32 to vector<1x128xi32>
    %5 = arith.cmpi eq, %0, %4 : vector<1x128xi32>
    %c0_i32_0 = arith.constant 0 : i32
    %6 = vector.broadcast %c0_i32_0 : i32 to vector<16x1xi32>
    %7 = arith.cmpi eq, %1, %6 : vector<16x1xi32>
    %c15_i32 = arith.constant 15 : i32
    %8 = vector.broadcast %c15_i32 : i32 to vector<16x1xi32>
    %9 = arith.cmpi eq, %1, %8 : vector<16x1xi32>
    %c0 = arith.constant 0 : index
    %c0_1 = arith.constant 0 : index
    %c0_2 = arith.constant 0 : index
    %c0_3 = arith.constant 0 : index
    %10 = vector.load %arg2[%c0, %c0_1, %c0_2, %c0_3] : memref<1x3x16x128xf32, #tpu.memory_space<vmem>>, vector<1x1x16x128xf32>
    %11 = vector.shape_cast %10 : vector<1x1x16x128xf32> to vector<16x128xf32>
    %12 = vector.extract_strided_slice %11 {offsets = [0, 1], sizes = [16, 127], strides = [1, 1]} : vector<16x128xf32> to vector<16x127xf32>
    %13 = vector.extract_strided_slice %11 {offsets = [0, 0], sizes = [16, 1], strides = [1, 1]} : vector<16x128xf32> to vector<16x1xf32>
    %14 = tpu.concatenate %12, %13 in 1 : vector<16x127xf32>, vector<16x1xf32> -> vector<16x128xf32>
    %cst = arith.constant 0.000000e+00 : f32
    %15 = vector.shape_cast %5 : vector<1x128xi1> to vector<1x128xi1>
    %16 = vector.broadcast %15 : vector<1x128xi1> to vector<16x128xi1>
    %17 = vector.broadcast %cst : f32 to vector<16x128xf32>
    %18 = arith.select %16, %17, %14 : vector<16x128xi1>, vector<16x128xf32>
    %19 = vector.extract_strided_slice %11 {offsets = [0, 127], sizes = [16, 1], strides = [1, 1]} : vector<16x128xf32> to vector<16x1xf32>
    %20 = vector.extract_strided_slice %11 {offsets = [0, 0], sizes = [16, 127], strides = [1, 1]} : vector<16x128xf32> to vector<16x127xf32>
    %21 = tpu.concatenate %19, %20 in 1 : vector<16x1xf32>, vector<16x127xf32> -> vector<16x128xf32>
    %cst_4 = arith.constant 0.000000e+00 : f32
    %22 = vector.shape_cast %3 : vector<1x128xi1> to vector<1x128xi1>
    %23 = vector.broadcast %22 : vector<1x128xi1> to vector<16x128xi1>
    %24 = vector.broadcast %cst_4 : f32 to vector<16x128xf32>
    %25 = arith.select %23, %24, %21 : vector<16x128xi1>, vector<16x128xf32>
    %26 = arith.subf %18, %25 : vector<16x128xf32>
    %c0_5 = arith.constant 0 : index
    %c0_6 = arith.constant 0 : index
    %c0_7 = arith.constant 0 : index
    %c0_8 = arith.constant 0 : index
    %27 = vector.load %arg3[%c0_5, %c0_6, %c0_7, %c0_8] : memref<1x1x8x128xf32, #tpu.memory_space<vmem>>, vector<1x1x1x128xf32>
    %28 = vector.shape_cast %27 : vector<1x1x1x128xf32> to vector<1x128xf32>
    %c0_9 = arith.constant 0 : index
    %c0_10 = arith.constant 0 : index
    %c4 = arith.constant 4 : index
    %c0_11 = arith.constant 0 : index
    %29 = vector.load %arg3[%c0_9, %c0_10, %c4, %c0_11] : memref<1x1x8x128xf32, #tpu.memory_space<vmem>>, vector<1x1x1x128xf32>
    %30 = vector.shape_cast %29 : vector<1x1x1x128xf32> to vector<1x128xf32>
    %31 = vector.extract_strided_slice %11 {offsets = [1, 0], sizes = [15, 128], strides = [1, 1]} : vector<16x128xf32> to vector<15x128xf32>
    %32 = vector.extract_strided_slice %11 {offsets = [0, 0], sizes = [1, 128], strides = [1, 1]} : vector<16x128xf32> to vector<1x128xf32>
    %33 = tpu.concatenate %31, %32 in 0 : vector<15x128xf32>, vector<1x128xf32> -> vector<16x128xf32>
    %34 = vector.shape_cast %9 : vector<16x1xi1> to vector<16x1xi1>
    %35 = vector.broadcast %34 : vector<16x1xi1> to vector<16x128xi1>
    %36 = vector.shape_cast %30 : vector<1x128xf32> to vector<1x128xf32>
    %37 = vector.broadcast %36 : vector<1x128xf32> to vector<16x128xf32>
    %38 = arith.select %35, %37, %33 : vector<16x128xi1>, vector<16x128xf32>
    %39 = vector.extract_strided_slice %11 {offsets = [15, 0], sizes = [1, 128], strides = [1, 1]} : vector<16x128xf32> to vector<1x128xf32>
    %40 = vector.extract_strided_slice %11 {offsets = [0, 0], sizes = [15, 128], strides = [1, 1]} : vector<16x128xf32> to vector<15x128xf32>
    %41 = tpu.concatenate %39, %40 in 0 : vector<1x128xf32>, vector<15x128xf32> -> vector<16x128xf32>
    %42 = vector.shape_cast %7 : vector<16x1xi1> to vector<16x1xi1>
    %43 = vector.broadcast %42 : vector<16x1xi1> to vector<16x128xi1>
    %44 = vector.shape_cast %28 : vector<1x128xf32> to vector<1x128xf32>
    %45 = vector.broadcast %44 : vector<1x128xf32> to vector<16x128xf32>
    %46 = arith.select %43, %45, %41 : vector<16x128xi1>, vector<16x128xf32>
    %47 = arith.subf %38, %46 : vector<16x128xf32>
    %c0_12 = arith.constant 0 : index
    %c1 = arith.constant 1 : index
    %c0_13 = arith.constant 0 : index
    %c0_14 = arith.constant 0 : index
    %48 = vector.load %arg2[%c0_12, %c1, %c0_13, %c0_14] : memref<1x3x16x128xf32, #tpu.memory_space<vmem>>, vector<1x1x16x128xf32>
    %49 = vector.shape_cast %48 : vector<1x1x16x128xf32> to vector<16x128xf32>
    %50 = vector.extract_strided_slice %49 {offsets = [0, 1], sizes = [16, 127], strides = [1, 1]} : vector<16x128xf32> to vector<16x127xf32>
    %51 = vector.extract_strided_slice %49 {offsets = [0, 0], sizes = [16, 1], strides = [1, 1]} : vector<16x128xf32> to vector<16x1xf32>
    %52 = tpu.concatenate %50, %51 in 1 : vector<16x127xf32>, vector<16x1xf32> -> vector<16x128xf32>
    %cst_15 = arith.constant 0.000000e+00 : f32
    %53 = vector.shape_cast %5 : vector<1x128xi1> to vector<1x128xi1>
    %54 = vector.broadcast %53 : vector<1x128xi1> to vector<16x128xi1>
    %55 = vector.broadcast %cst_15 : f32 to vector<16x128xf32>
    %56 = arith.select %54, %55, %52 : vector<16x128xi1>, vector<16x128xf32>
    %57 = vector.extract_strided_slice %49 {offsets = [0, 127], sizes = [16, 1], strides = [1, 1]} : vector<16x128xf32> to vector<16x1xf32>
    %58 = vector.extract_strided_slice %49 {offsets = [0, 0], sizes = [16, 127], strides = [1, 1]} : vector<16x128xf32> to vector<16x127xf32>
    %59 = tpu.concatenate %57, %58 in 1 : vector<16x1xf32>, vector<16x127xf32> -> vector<16x128xf32>
    %cst_16 = arith.constant 0.000000e+00 : f32
    %60 = vector.shape_cast %3 : vector<1x128xi1> to vector<1x128xi1>
    %61 = vector.broadcast %60 : vector<1x128xi1> to vector<16x128xi1>
    %62 = vector.broadcast %cst_16 : f32 to vector<16x128xf32>
    %63 = arith.select %61, %62, %59 : vector<16x128xi1>, vector<16x128xf32>
    %64 = arith.subf %56, %63 : vector<16x128xf32>
    %c0_17 = arith.constant 0 : index
    %c0_18 = arith.constant 0 : index
    %c1_19 = arith.constant 1 : index
    %c0_20 = arith.constant 0 : index
    %65 = vector.load %arg3[%c0_17, %c0_18, %c1_19, %c0_20] : memref<1x1x8x128xf32, #tpu.memory_space<vmem>>, vector<1x1x1x128xf32>
    %66 = vector.shape_cast %65 : vector<1x1x1x128xf32> to vector<1x128xf32>
    %c0_21 = arith.constant 0 : index
    %c0_22 = arith.constant 0 : index
    %c5 = arith.constant 5 : index
    %c0_23 = arith.constant 0 : index
    %67 = vector.load %arg3[%c0_21, %c0_22, %c5, %c0_23] : memref<1x1x8x128xf32, #tpu.memory_space<vmem>>, vector<1x1x1x128xf32>
    %68 = vector.shape_cast %67 : vector<1x1x1x128xf32> to vector<1x128xf32>
    %69 = vector.extract_strided_slice %49 {offsets = [1, 0], sizes = [15, 128], strides = [1, 1]} : vector<16x128xf32> to vector<15x128xf32>
    %70 = vector.extract_strided_slice %49 {offsets = [0, 0], sizes = [1, 128], strides = [1, 1]} : vector<16x128xf32> to vector<1x128xf32>
    %71 = tpu.concatenate %69, %70 in 0 : vector<15x128xf32>, vector<1x128xf32> -> vector<16x128xf32>
    %72 = vector.shape_cast %9 : vector<16x1xi1> to vector<16x1xi1>
    %73 = vector.broadcast %72 : vector<16x1xi1> to vector<16x128xi1>
    %74 = vector.shape_cast %68 : vector<1x128xf32> to vector<1x128xf32>
    %75 = vector.broadcast %74 : vector<1x128xf32> to vector<16x128xf32>
    %76 = arith.select %73, %75, %71 : vector<16x128xi1>, vector<16x128xf32>
    %77 = vector.extract_strided_slice %49 {offsets = [15, 0], sizes = [1, 128], strides = [1, 1]} : vector<16x128xf32> to vector<1x128xf32>
    %78 = vector.extract_strided_slice %49 {offsets = [0, 0], sizes = [15, 128], strides = [1, 1]} : vector<16x128xf32> to vector<15x128xf32>
    %79 = tpu.concatenate %77, %78 in 0 : vector<1x128xf32>, vector<15x128xf32> -> vector<16x128xf32>
    %80 = vector.shape_cast %7 : vector<16x1xi1> to vector<16x1xi1>
    %81 = vector.broadcast %80 : vector<16x1xi1> to vector<16x128xi1>
    %82 = vector.shape_cast %66 : vector<1x128xf32> to vector<1x128xf32>
    %83 = vector.broadcast %82 : vector<1x128xf32> to vector<16x128xf32>
    %84 = arith.select %81, %83, %79 : vector<16x128xi1>, vector<16x128xf32>
    %85 = arith.subf %76, %84 : vector<16x128xf32>
    %c0_24 = arith.constant 0 : index
    %c2 = arith.constant 2 : index
    %c0_25 = arith.constant 0 : index
    %c0_26 = arith.constant 0 : index
    %86 = vector.load %arg2[%c0_24, %c2, %c0_25, %c0_26] : memref<1x3x16x128xf32, #tpu.memory_space<vmem>>, vector<1x1x16x128xf32>
    %87 = vector.shape_cast %86 : vector<1x1x16x128xf32> to vector<16x128xf32>
    %88 = vector.extract_strided_slice %87 {offsets = [0, 1], sizes = [16, 127], strides = [1, 1]} : vector<16x128xf32> to vector<16x127xf32>
    %89 = vector.extract_strided_slice %87 {offsets = [0, 0], sizes = [16, 1], strides = [1, 1]} : vector<16x128xf32> to vector<16x1xf32>
    %90 = tpu.concatenate %88, %89 in 1 : vector<16x127xf32>, vector<16x1xf32> -> vector<16x128xf32>
    %cst_27 = arith.constant 0.000000e+00 : f32
    %91 = vector.shape_cast %5 : vector<1x128xi1> to vector<1x128xi1>
    %92 = vector.broadcast %91 : vector<1x128xi1> to vector<16x128xi1>
    %93 = vector.broadcast %cst_27 : f32 to vector<16x128xf32>
    %94 = arith.select %92, %93, %90 : vector<16x128xi1>, vector<16x128xf32>
    %95 = vector.extract_strided_slice %87 {offsets = [0, 127], sizes = [16, 1], strides = [1, 1]} : vector<16x128xf32> to vector<16x1xf32>
    %96 = vector.extract_strided_slice %87 {offsets = [0, 0], sizes = [16, 127], strides = [1, 1]} : vector<16x128xf32> to vector<16x127xf32>
    %97 = tpu.concatenate %95, %96 in 1 : vector<16x1xf32>, vector<16x127xf32> -> vector<16x128xf32>
    %cst_28 = arith.constant 0.000000e+00 : f32
    %98 = vector.shape_cast %3 : vector<1x128xi1> to vector<1x128xi1>
    %99 = vector.broadcast %98 : vector<1x128xi1> to vector<16x128xi1>
    %100 = vector.broadcast %cst_28 : f32 to vector<16x128xf32>
    %101 = arith.select %99, %100, %97 : vector<16x128xi1>, vector<16x128xf32>
    %102 = arith.subf %94, %101 : vector<16x128xf32>
    %c0_29 = arith.constant 0 : index
    %c0_30 = arith.constant 0 : index
    %c2_31 = arith.constant 2 : index
    %c0_32 = arith.constant 0 : index
    %103 = vector.load %arg3[%c0_29, %c0_30, %c2_31, %c0_32] : memref<1x1x8x128xf32, #tpu.memory_space<vmem>>, vector<1x1x1x128xf32>
    %104 = vector.shape_cast %103 : vector<1x1x1x128xf32> to vector<1x128xf32>
    %c0_33 = arith.constant 0 : index
    %c0_34 = arith.constant 0 : index
    %c6 = arith.constant 6 : index
    %c0_35 = arith.constant 0 : index
    %105 = vector.load %arg3[%c0_33, %c0_34, %c6, %c0_35] : memref<1x1x8x128xf32, #tpu.memory_space<vmem>>, vector<1x1x1x128xf32>
    %106 = vector.shape_cast %105 : vector<1x1x1x128xf32> to vector<1x128xf32>
    %107 = vector.extract_strided_slice %87 {offsets = [1, 0], sizes = [15, 128], strides = [1, 1]} : vector<16x128xf32> to vector<15x128xf32>
    %108 = vector.extract_strided_slice %87 {offsets = [0, 0], sizes = [1, 128], strides = [1, 1]} : vector<16x128xf32> to vector<1x128xf32>
    %109 = tpu.concatenate %107, %108 in 0 : vector<15x128xf32>, vector<1x128xf32> -> vector<16x128xf32>
    %110 = vector.shape_cast %9 : vector<16x1xi1> to vector<16x1xi1>
    %111 = vector.broadcast %110 : vector<16x1xi1> to vector<16x128xi1>
    %112 = vector.shape_cast %106 : vector<1x128xf32> to vector<1x128xf32>
    %113 = vector.broadcast %112 : vector<1x128xf32> to vector<16x128xf32>
    %114 = arith.select %111, %113, %109 : vector<16x128xi1>, vector<16x128xf32>
    %115 = vector.extract_strided_slice %87 {offsets = [15, 0], sizes = [1, 128], strides = [1, 1]} : vector<16x128xf32> to vector<1x128xf32>
    %116 = vector.extract_strided_slice %87 {offsets = [0, 0], sizes = [15, 128], strides = [1, 1]} : vector<16x128xf32> to vector<15x128xf32>
    %117 = tpu.concatenate %115, %116 in 0 : vector<1x128xf32>, vector<15x128xf32> -> vector<16x128xf32>
    %118 = vector.shape_cast %7 : vector<16x1xi1> to vector<16x1xi1>
    %119 = vector.broadcast %118 : vector<16x1xi1> to vector<16x128xi1>
    %120 = vector.shape_cast %104 : vector<1x128xf32> to vector<1x128xf32>
    %121 = vector.broadcast %120 : vector<1x128xf32> to vector<16x128xf32>
    %122 = arith.select %119, %121, %117 : vector<16x128xi1>, vector<16x128xf32>
    %123 = arith.subf %114, %122 : vector<16x128xf32>
    %124 = arith.mulf %102, %85 : vector<16x128xf32>
    %125 = arith.mulf %64, %123 : vector<16x128xf32>
    %126 = arith.subf %124, %125 : vector<16x128xf32>
    %c0_36 = arith.constant 0 : index
    %c0_37 = arith.constant 0 : index
    %c0_38 = arith.constant 0 : index
    %c0_39 = arith.constant 0 : index
    %127 = vector.load %arg4[%c0_36, %c0_37, %c0_38, %c0_39] : memref<1x3x16x128xf32, #tpu.memory_space<vmem>>, vector<1x1x16x128xf32>
    %128 = vector.shape_cast %127 : vector<1x1x16x128xf32> to vector<16x128xf32>
    %129 = vector.shape_cast %126 : vector<16x128xf32> to vector<1x1x16x128xf32>
    tpu.vector_store %arg4[%c0_36, %c0_37, %c0_38, %c0_39], %129 {strides = array<i32>} : memref<1x3x16x128xf32, #tpu.memory_space<vmem>>, vector<1x1x16x128xf32>,
    %130 = arith.mulf %26, %123 : vector<16x128xf32>
    %131 = arith.mulf %102, %47 : vector<16x128xf32>
    %132 = arith.subf %130, %131 : vector<16x128xf32>
    %c0_40 = arith.constant 0 : index
    %c1_41 = arith.constant 1 : index
    %c0_42 = arith.constant 0 : index
    %c0_43 = arith.constant 0 : index
    %133 = vector.load %arg4[%c0_40, %c1_41, %c0_42, %c0_43] : memref<1x3x16x128xf32, #tpu.memory_space<vmem>>, vector<1x1x16x128xf32>
    %134 = vector.shape_cast %133 : vector<1x1x16x128xf32> to vector<16x128xf32>
    %135 = vector.shape_cast %132 : vector<16x128xf32> to vector<1x1x16x128xf32>
    tpu.vector_store %arg4[%c0_40, %c1_41, %c0_42, %c0_43], %135 {strides = array<i32>} : memref<1x3x16x128xf32, #tpu.memory_space<vmem>>, vector<1x1x16x128xf32>,
    %136 = arith.mulf %64, %47 : vector<16x128xf32>
    %137 = arith.mulf %26, %85 : vector<16x128xf32>
    %138 = arith.subf %136, %137 : vector<16x128xf32>
    %c0_44 = arith.constant 0 : index
    %c2_45 = arith.constant 2 : index
    %c0_46 = arith.constant 0 : index
    %c0_47 = arith.constant 0 : index
    %139 = vector.load %arg4[%c0_44, %c2_45, %c0_46, %c0_47] : memref<1x3x16x128xf32, #tpu.memory_space<vmem>>, vector<1x1x16x128xf32>
    %140 = vector.shape_cast %139 : vector<1x1x16x128xf32> to vector<16x128xf32>
    %141 = vector.shape_cast %138 : vector<16x128xf32> to vector<1x1x16x128xf32>
    tpu.vector_store %arg4[%c0_44, %c2_45, %c0_46, %c0_47], %141 {strides = array<i32>} : memref<1x3x16x128xf32, #tpu.memory_space<vmem>>, vector<1x1x16x128xf32>,
    return
  }
  func.func @transform_0(%arg0: i32, %arg1: i32) -> (i32, i32, i32, i32) {
    %c0_i32 = arith.constant 0 : i32
    %c0_i32_0 = arith.constant 0 : i32
    %c0_i32_1 = arith.constant 0 : i32
    return %arg0, %c0_i32, %arg1, %c0_i32_0 : i32, i32, i32, i32
  }
  func.func @transform_1(%arg0: i32, %arg1: i32) -> (i32, i32, i32, i32) {
    %c0_i32 = arith.constant 0 : i32
    %c0_i32_0 = arith.constant 0 : i32
    %c0_i32_1 = arith.constant 0 : i32
    return %arg0, %arg1, %c0_i32, %c0_i32_0 : i32, i32, i32, i32
  }
  func.func @transform_2(%arg0: i32, %arg1: i32) -> (i32, i32, i32, i32) {
    %c0_i32 = arith.constant 0 : i32
    %c0_i32_0 = arith.constant 0 : i32
    %c0_i32_1 = arith.constant 0 : i32
    return %arg0, %c0_i32, %arg1, %c0_i32_0 : i32, i32, i32, i32
  }
}

</mosaic_0001>

<llo_original>
// kernel: tpu_custom_call.1
$region0: #{tpu_custom_call.1}
  #allocation0 [shape = 'u32[]', space=smem, size = 0x4, offset = 0x4, fixed_abs, tag = 'smem constant byte address 0x4 - core index']
  #allocation1 [shape = 'u32[72,128]{1,0:T(1,128)}', space=vmem, size = 0x9000, scoped, tag = 'internal scratch']
  %s0 = inlined_call_operand.hbm [shape: f32[2,3,16,128], index: 0, kind: input, shape index: {}]
  %s1 = inlined_call_operand.hbm [shape: f32[2,1,8,128], index: 1, kind: input, shape index: {}]
  %s2 = inlined_call_operand.hbm [shape: f32[2,3,16,128], index: 2, kind: output, shape index: {}]
  %s3 = sld [smem:[#allocation0]]
  $region49: #{tpu_custom_call.1} parent=0
    _
  %s5 = ssub.s32 1, %s3
  %s6 = scalar_select 0, %s5, %s3
  $region1: #{tpu_custom_call.1} parent=0
    #allocation2 [shape = 'u8[49152]{0}', space=vmem, size = 0xc000, scoped, tag = 'input window, operand 0']
    #allocation3 [shape = 's32[2]{0}', space=sflag, size = 0x8, scoped, tag = 'scoped memory for tpu_custom_call.1']
    #allocation4 [shape = 's32[2]{0}', space=sflag, size = 0x8, scoped, tag = 'scoped memory for tpu_custom_call.1']
    #allocation5 [shape = 'u8[8192]{0}', space=vmem, size = 0x2000, scoped, tag = 'input window, operand 1']
    #allocation6 [shape = 's32[2]{0}', space=sflag, size = 0x8, scoped, tag = 'scoped memory for tpu_custom_call.1']
    #allocation7 [shape = 'u8[49152]{0}', space=vmem, size = 0xc000, scoped, tag = 'output window, operand 0']
    %7 = vsyncpa [#allocation3], 0
    %s8 = scalar_lea.sflag [#allocation3], 1
    %9 = vsyncpa %s8, 0
    %10 = vsyncpa [#allocation6], 0
    %s11 = scalar_lea.sflag [#allocation6], 1
    %12 = vsyncpa %s11, 0
    %13 = vsyncpa [#allocation4], 0
    %s14 = scalar_lea.sflag [#allocation4], 1
    %15 = vsyncpa %s14, 0
    loop: start=0, step=1, limit=4
    $region2: #{tpu_custom_call.1} parent=1 // loop_pre_header
      _
    $region3: #{tpu_custom_call.1} parent=1 // loop_header
      %s17 = sphi 0, %s21
      %p18 = scmp.ge.s32.totalorder %s17, 4
      %s24 = sphi 0, %s36
      %s25 = sphi 0, %s32
      %s26 = sphi 0, %s24
      %s27 = sphi 0, %s25
      %s28 = sphi 0, %s26
      %s29 = sphi 0, %s27
      %s41 = sphi 0, %s43
      %s44 = sphi 0, %s41
      %s45 = sphi 0, %s44
      %s61 = sphi 0, %s45
      %s69 = sphi 0, %s71
      %s72 = sphi 0, %s69
      %s73 = sphi 0, %s72
      %s89 = sphi 0, %s73
      %s97 = sphi 0, %s99
      %s100 = sphi 0, %s97
      %s101 = sphi 0, %s100
      %s117 = sphi 0, %s101
    $region4: #{tpu_custom_call.1} parent=1 // loop_header_branch
      %20 = sbr.rel (%p18) target = $region8
    $region5: #{tpu_custom_call.1} parent=1 // loop_body
      %s22 = ssub.s32 %s17, 1
      %s23 = ssub.s32 %s17, 2
      %s30 = sadd.s32 1, %s25
      %p31 = scmp.ge.s32.totalorder %s30, 1
      %s32 = scalar_select %p31, 0, %s30
      %s33 = sadd.s32 1, %s24
      %s34 = scalar_select %p31, %s33, %s24
      %p35 = scmp.ge.s32.totalorder %s34, 2
      %s36 = scalar_select %p35, 0, %s34
      %s37 = ssub.s32 %s24, %s36
      %s38 = ssub.s32 %s25, %s32
      %s39 = sor.u32 %s37, %s38
      %p40 = scmp.eq.s32.totalorder %s39, 0
      %s42 = sadd.s32 %s41, 1
      %s43 = scalar_select %p40, %s41, %s42
      %p46 = pneg %p40
      %p47 = scmp.eq.s32.totalorder %s17, 1
      %p48 = por %p46, %p47
      %p49 = scmp.ne.s32.totalorder %s41, %s44
      %p50 = scmp.eq.s32.totalorder %s17, 0
      %p51 = por %p49, %p50
      %p52 = scmp.ne.s32.totalorder %s41, %s44
      %p53 = scmp.eq.s32.totalorder %s22, 1
      %p54 = por %p52, %p53
      %p55 = scmp.ne.s32.totalorder %s44, %s45
      %p56 = scmp.eq.s32.totalorder %s22, 0
      %p57 = por %p55, %p56
      %p58 = scmp.ne.s32.totalorder %s44, %s45
      %p59 = scmp.eq.s32.totalorder %s23, 1
      %p60 = por %p58, %p59
      %p62 = scmp.ne.s32.totalorder %s45, %s61
      %p63 = scmp.eq.s32.totalorder %s23, 0
      %p64 = por %p62, %p63
      %s65 = ssub.s32 %s24, %s36
      %s66 = ssub.s32 %s25, %s32
      %s67 = sor.u32 %s65, %s66
      %p68 = scmp.eq.s32.totalorder %s67, 0
      %s70 = sadd.s32 %s69, 1
      %s71 = scalar_select %p68, %s69, %s70
      %p74 = pneg %p68
      %p75 = scmp.eq.s32.totalorder %s17, 1
      %p76 = por %p74, %p75
      %p77 = scmp.ne.s32.totalorder %s69, %s72
      %p78 = scmp.eq.s32.totalorder %s17, 0
      %p79 = por %p77, %p78
      %p80 = scmp.ne.s32.totalorder %s69, %s72
      %p81 = scmp.eq.s32.totalorder %s22, 1
      %p82 = por %p80, %p81
      %p83 = scmp.ne.s32.totalorder %s72, %s73
      %p84 = scmp.eq.s32.totalorder %s22, 0
      %p85 = por %p83, %p84
      %p86 = scmp.ne.s32.totalorder %s72, %s73
      %p87 = scmp.eq.s32.totalorder %s23, 1
      %p88 = por %p86, %p87
      %p90 = scmp.ne.s32.totalorder %s73, %s89
      %p91 = scmp.eq.s32.totalorder %s23, 0
      %p92 = por %p90, %p91
      %s93 = ssub.s32 %s24, %s36
      %s94 = ssub.s32 %s25, %s32
      %s95 = sor.u32 %s93, %s94
      %p96 = scmp.eq.s32.totalorder %s95, 0
      %s98 = sadd.s32 %s97, 1
      %s99 = scalar_select %p96, %s97, %s98
      %p102 = pneg %p96
      %p103 = scmp.eq.s32.totalorder %s17, 1
      %p104 = por %p102, %p103
      %p105 = scmp.ne.s32.totalorder %s97, %s100
      %p106 = scmp.eq.s32.totalorder %s17, 0
      %p107 = por %p105, %p106
      %p108 = scmp.ne.s32.totalorder %s97, %s100
      %p109 = scmp.eq.s32.totalorder %s22, 1
      %p110 = por %p108, %p109
      %p111 = scmp.ne.s32.totalorder %s100, %s101
      %p112 = scmp.eq.s32.totalorder %s22, 0
      %p113 = por %p111, %p112
      %p114 = scmp.ne.s32.totalorder %s100, %s101
      %p115 = scmp.eq.s32.totalorder %s23, 1
      %p116 = por %p114, %p115
      %p118 = scmp.ne.s32.totalorder %s101, %s117
      %p119 = scmp.eq.s32.totalorder %s23, 0
      %p120 = por %p118, %p119
      %p121 = scmp.le.s32.totalorder 1, %s17
      %p122 = scmp.lt.s32.totalorder %s17, 3
      %p123 = pnand %p121, %p122
      %p124 = pneg %p123
      // Predicated region
      $region9: #{tpu_custom_call.1} parent=5 // pred_check
        _
      $region10: #{tpu_custom_call.1} parent=5 // pred_check_branch
        %126 = sbr.rel (%p123) target = $region12
      $region11: #{tpu_custom_call.1} parent=5 // pred_region
        %s127 = ssub.s32 %s17, 1
      $region12: #{tpu_custom_call.1} parent=5 // pred_fallthru
        _
      %p128 = scmp.lt.s32.totalorder %s17, 2
      // Predicated region
      $region13: #{tpu_custom_call.1} parent=5 // pred_check
        %p129 = pneg %p128
      $region14: #{tpu_custom_call.1} parent=5 // pred_check_branch
        %131 = sbr.rel (%p129) target = $region16
      $region15: #{tpu_custom_call.1} parent=5 // pred_region
        // Predicated region
        $region17: #{tpu_custom_call.1} parent=15 // pred_check
          %p132 = pneg %p51
        $region18: #{tpu_custom_call.1} parent=15 // pred_check_branch
          %134 = sbr.rel (%p132) target = $region20
        $region19: #{tpu_custom_call.1} parent=15 // pred_region
          %s135 = sand.u32 %s41, 1
          %s136 = scalar_lea.sflag [#allocation3], %s135
          %s137 = sand.u32 %s41, 1
          %s138 = smul.addr %s137, 48
          %s139 = scalar_lea.vmem [#allocation2], %s138
          %s140 = smul.u32 2, %s25
          %142 = vsyncadd %s136, 0
          %s143 = smul.addr %s24, 6
          %s144 = sadd.s32 %s140, %s143
          %s145 = smul.addr %s144, 8
          %s146 = scalar_lea.hbm %s0, %s145
          %s147 = sshll.u32 %s146, 4
          %s148 = int_to_ptr.hbm [resolvable:$true] %s147
          %s149 = sshll.u32 %s139, 4
          %s150 = int_to_ptr.vmem [resolvable:$true] %s149
          %155 = dma.hbm_to_vmem [thread:$0]  %s148, 768, %s150, %s136, 128, 128, 8
        $region20: #{tpu_custom_call.1} parent=15 // pred_fallthru
          _
        // Predicated region
        $region21: #{tpu_custom_call.1} parent=15 // pred_check
          %p156 = pneg %p79
        $region22: #{tpu_custom_call.1} parent=15 // pred_check_branch
          %158 = sbr.rel (%p156) target = $region24
        $region23: #{tpu_custom_call.1} parent=15 // pred_region
          %s159 = sand.u32 %s69, 1
          %s160 = scalar_lea.sflag [#allocation6], %s159
          %s161 = sand.u32 %s69, 1
          %s162 = smul.addr %s161, 8
          %s163 = scalar_lea.vmem [#allocation5], %s162
          %165 = vsyncadd %s160, 0
          %s166 = sadd.s32 %s25, %s24
          %s167 = smul.addr %s166, 8
          %s168 = scalar_lea.hbm %s1, %s167
          %s170 = sshll.u32 %s168, 4
          %s171 = int_to_ptr.hbm [resolvable:$true] %s170
          %s172 = sshll.u32 %s163, 4
          %s173 = int_to_ptr.vmem [resolvable:$true] %s172
          %175 = dma.hbm_to_vmem [thread:$0]  %s171, 128, %s173, %s160
        $region24: #{tpu_custom_call.1} parent=15 // pred_fallthru
          _
      $region16: #{tpu_custom_call.1} parent=5 // pred_fallthru
        _
      %p176 = scmp.le.s32.totalorder 1, %s17
      %p177 = scmp.lt.s32.totalorder %s17, 3
      %p178 = pnand %p176, %p177
      %p179 = pneg %p178
      // Predicated region
      $region25: #{tpu_custom_call.1} parent=5 // pred_check
        _
      $region26: #{tpu_custom_call.1} parent=5 // pred_check_branch
        %181 = sbr.rel (%p178) target = $region28
      $region27: #{tpu_custom_call.1} parent=5 // pred_region
        %s182 = ssub.s32 %s17, 1
        %s183 = sand.u32 %s44, 1
        %s184 = scalar_lea.sflag [#allocation3], %s183
        %s185 = sand.u32 %s44, 1
        %s186 = smul.addr %s185, 48
        %s187 = scalar_lea.vmem [#allocation2], %s186
        // Predicated region
        $region29: #{tpu_custom_call.1} parent=27 // pred_check
          %p188 = pneg %p57
        $region30: #{tpu_custom_call.1} parent=27 // pred_check_branch
          %190 = sbr.rel (%p188) target = $region32
        $region31: #{tpu_custom_call.1} parent=27 // pred_region
          %192 = dma.done %s184, 768
        $region32: #{tpu_custom_call.1} parent=27 // pred_fallthru
          _
        %s193 = sand.u32 %s72, 1
        %s194 = scalar_lea.sflag [#allocation6], %s193
        %s195 = sand.u32 %s72, 1
        %s196 = smul.addr %s195, 8
        %s197 = scalar_lea.vmem [#allocation5], %s196
        // Predicated region
        $region33: #{tpu_custom_call.1} parent=27 // pred_check
          %p198 = pneg %p85
        $region34: #{tpu_custom_call.1} parent=27 // pred_check_branch
          %200 = sbr.rel (%p198) target = $region36
        $region35: #{tpu_custom_call.1} parent=27 // pred_region
          %202 = dma.done %s194, 128
        $region36: #{tpu_custom_call.1} parent=27 // pred_fallthru
          _
        %s203 = sand.u32 %s44, 1
        %s204 = scalar_lea.sflag [#allocation3], %s203
        %s205 = sand.u32 %s44, 1
        %s206 = smul.addr %s205, 48
        %s207 = scalar_lea.vmem [#allocation2], %s206
        %p208 = pneg %p57
        %p209 = pneg %p54
        %s210 = sand.u32 %s72, 1
        %s211 = scalar_lea.sflag [#allocation6], %s210
        %s212 = sand.u32 %s72, 1
        %s213 = smul.addr %s212, 8
        %s214 = scalar_lea.vmem [#allocation5], %s213
        %p215 = pneg %p85
        %p216 = pneg %p82
        %p217 = pneg %p113
        %p218 = pneg %p110
        %s219 = sand.u32 %s100, 1
        %s220 = scalar_lea.sflag [#allocation4], %s219
        %s221 = sand.u32 %s100, 1
        %s222 = smul.addr %s221, 48
        %s223 = scalar_lea.vmem [#allocation7], %s222
        %s224 = smul.u32 2, %s27
        %s225 = smul.u32 2, %s27
        %v226 = vlaneseq
        %v227 = vand.u32 %v226, 127
        %v228 = vlaneseq
        %v229 = vshrl.u32 %v228, 7
        %v230 = vadd.s32 %v229, 8
        %vm231 = vcmp.eq.s32.totalorder %v227, 0
        %vm232 = vcmp.eq.s32.totalorder %v227, 127
        %vm233 = vcmp.eq.s32.totalorder %v229, 0
        %vm234 = vcmp.eq.s32.totalorder %v230, 0
        %vm235 = vcmp.eq.s32.totalorder %v229, 15
        %vm236 = vcmp.eq.s32.totalorder %v230, 15
        %v237 = vld [vmem:[%s187] sm:$0xff]
        %v238 = vld [vmem:[%s187 + $0x8] sm:$0xff]
        %241 = vrot.lane.b32.xlu0 %v237, 127
        %v242 = vpop.permute.xlu0 %241
        %243 = vrot.lane.b32.xlu0 %v238, 127
        %v244 = vpop.permute.xlu0 %243
        %v247 = vsel %vm232, 1, 0
        %vm248 = vcmp.eq.s32.totalorder %v247, 1
        %v249 = vsel %vm248, 0.0, %v242
        %v250 = vsel %vm248, 0.0, %v244
        %251 = vrot.lane.b32.xlu0 %v237, 1
        %v252 = vpop.permute.xlu0 %251
        %253 = vrot.lane.b32.xlu0 %v238, 1
        %v254 = vpop.permute.xlu0 %253
        %v257 = vsel %vm231, 1, 0
        %vm258 = vcmp.eq.s32.totalorder %v257, 1
        %v259 = vsel %vm258, 0.0, %v252
        %v260 = vsel %vm258, 0.0, %v254
        %v261 = vsub.f32 %v249, %v259
        %v262 = vsub.f32 %v250, %v260
        %v263 = vld [vmem:[%s197] sm:$0x1]
        %v264 = vld [vmem:[%s197 + $0x4] sm:$0x1]
        %vm265 = vcmask 1046528
        %v266 = vrot.slane %v237, 1
        %v267 = vrot.slane %v238, 1
        %v268 = vsel %vm265, %v266, %v267
        %v272 = vsel %vm265, %v267, %v266
        %v273 = vsel %vm235, 1, 0
        %v274 = vsel %vm236, 1, 0
        %vm275 = vcmp.eq.s32.totalorder %v273, 1
        %vm276 = vcmp.eq.s32.totalorder %v274, 1
        %v277 = vperm.slane %v264, 0
        %v278 = vsel %vm275, %v277, %v268
        %v279 = vsel %vm276, %v277, %v272
        %v280 = vrot.slane %v238, 7
        %vm282 = vcmask 1040384
        %v283 = vrot.slane %v237, 7
        %v284 = vsel %vm282, %v283, %v280
        %v287 = vsel %vm282, %v280, %v283
        %v288 = vsel %vm233, 1, 0
        %v289 = vsel %vm234, 1, 0
        %vm290 = vcmp.eq.s32.totalorder %v288, 1
        %vm291 = vcmp.eq.s32.totalorder %v289, 1
        %v292 = vperm.slane %v263, 0
        %v293 = vsel %vm290, %v292, %v287
        %v294 = vsel %vm291, %v292, %v284
        %v295 = vsub.f32 %v278, %v293
        %v296 = vsub.f32 %v279, %v294
        %s297 = scalar_lea.vmem %s187, 16 [#allocation2]
        %v298 = vld [vmem:[%s297] sm:$0xff]
        %v299 = vld [vmem:[%s297 + $0x8] sm:$0xff]
        %302 = vrot.lane.b32.xlu0 %v298, 127
        %v303 = vpop.permute.xlu0 %302
        %304 = vrot.lane.b32.xlu0 %v299, 127
        %v305 = vpop.permute.xlu0 %304
        %v308 = vsel %vm248, 0.0, %v303
        %v309 = vsel %vm248, 0.0, %v305
        %310 = vrot.lane.b32.xlu0 %v298, 1
        %v311 = vpop.permute.xlu0 %310
        %312 = vrot.lane.b32.xlu0 %v299, 1
        %v313 = vpop.permute.xlu0 %312
        %v316 = vsel %vm258, 0.0, %v311
        %v317 = vsel %vm258, 0.0, %v313
        %v318 = vsub.f32 %v308, %v316
        %v319 = vsub.f32 %v309, %v317
        %v320 = vld [vmem:[%s197 + $0x1] sm:$0x1]
        %v321 = vld [vmem:[%s197 + $0x5] sm:$0x1]
        %v322 = vrot.slane %v298, 1
        %v323 = vrot.slane %v299, 1
        %v324 = vsel %vm265, %v322, %v323
        %v328 = vsel %vm265, %v323, %v322
        %v329 = vperm.slane %v321, 0
        %v330 = vsel %vm275, %v329, %v324
        %v331 = vsel %vm276, %v329, %v328
        %v332 = vrot.slane %v299, 7
        %v334 = vrot.slane %v298, 7
        %v335 = vsel %vm282, %v334, %v332
        %v338 = vsel %vm282, %v332, %v334
        %v339 = vperm.slane %v320, 0
        %v340 = vsel %vm290, %v339, %v338
        %v341 = vsel %vm291, %v339, %v335
        %v342 = vsub.f32 %v330, %v340
        %v343 = vsub.f32 %v331, %v341
        %s344 = scalar_lea.vmem %s187, 32 [#allocation2]
        %v345 = vld [vmem:[%s344] sm:$0xff]
        %v346 = vld [vmem:[%s344 + $0x8] sm:$0xff]
        %349 = vrot.lane.b32.xlu0 %v345, 127
        %v350 = vpop.permute.xlu0 %349
        %351 = vrot.lane.b32.xlu0 %v346, 127
        %v352 = vpop.permute.xlu0 %351
        %v355 = vsel %vm248, 0.0, %v350
        %v356 = vsel %vm248, 0.0, %v352
        %357 = vrot.lane.b32.xlu0 %v345, 1
        %v358 = vpop.permute.xlu0 %357
        %359 = vrot.lane.b32.xlu0 %v346, 1
        %v360 = vpop.permute.xlu0 %359
        %v363 = vsel %vm258, 0.0, %v358
        %v364 = vsel %vm258, 0.0, %v360
        %v365 = vsub.f32 %v355, %v363
        %v366 = vsub.f32 %v356, %v364
        %v367 = vld [vmem:[%s197 + $0x2] sm:$0x1]
        %v368 = vld [vmem:[%s197 + $0x6] sm:$0x1]
        %v369 = vrot.slane %v345, 1
        %v370 = vrot.slane %v346, 1
        %v371 = vsel %vm265, %v369, %v370
        %v375 = vsel %vm265, %v370, %v369
        %v376 = vperm.slane %v368, 0
        %v377 = vsel %vm275, %v376, %v371
        %v378 = vsel %vm276, %v376, %v375
        %v379 = vrot.slane %v346, 7
        %v381 = vrot.slane %v345, 7
        %v382 = vsel %vm282, %v381, %v379
        %v385 = vsel %vm282, %v379, %v381
        %v386 = vperm.slane %v367, 0
        %v387 = vsel %vm290, %v386, %v385
        %v388 = vsel %vm291, %v386, %v382
        %v389 = vsub.f32 %v377, %v387
        %v390 = vsub.f32 %v378, %v388
        %v391 = vmul.f32 %v365, %v342
        %v392 = vmul.f32 %v366, %v343
        %v393 = vmul.f32 %v318, %v389
        %v394 = vmul.f32 %v319, %v390
        %v395 = vsub.f32 %v391, %v393
        %v396 = vsub.f32 %v392, %v394
        %397 = vst [vmem:[%s223] sm:$0xff] %v395
        %398 = vst [vmem:[%s223 + $0x8] sm:$0xff] %v396
        %v399 = vmul.f32 %v261, %v389
        %v400 = vmul.f32 %v262, %v390
        %v401 = vmul.f32 %v365, %v295
        %v402 = vmul.f32 %v366, %v296
        %v403 = vsub.f32 %v399, %v401
        %v404 = vsub.f32 %v400, %v402
        %s405 = scalar_lea.vmem %s223, 16 [#allocation7]
        %406 = vst [vmem:[%s405] sm:$0xff] %v403
        %407 = vst [vmem:[%s405 + $0x8] sm:$0xff] %v404
        %v408 = vmul.f32 %v318, %v295
        %v409 = vmul.f32 %v319, %v296
        %v410 = vmul.f32 %v261, %v342
        %v411 = vmul.f32 %v262, %v343
        %v412 = vsub.f32 %v408, %v410
        %v413 = vsub.f32 %v409, %v411
        %s414 = scalar_lea.vmem %s223, 32 [#allocation7]
        %415 = vst [vmem:[%s414] sm:$0xff] %v412
        %416 = vst [vmem:[%s414 + $0x8] sm:$0xff] %v413
        %s417 = sand.u32 %s100, 1
        %s418 = scalar_lea.sflag [#allocation4], %s417
        %s419 = sand.u32 %s100, 1
        %s420 = smul.addr %s419, 48
        %s421 = scalar_lea.vmem [#allocation7], %s420
        // Predicated region
        $region37: #{tpu_custom_call.1} parent=27 // pred_check
          %p422 = pneg %p110
        $region38: #{tpu_custom_call.1} parent=27 // pred_check_branch
          %424 = sbr.rel (%p422) target = $region40
        $region39: #{tpu_custom_call.1} parent=27 // pred_region
          %s425 = smul.u32 2, %s27
          %427 = vsyncadd %s418, 0
          %s428 = smul.addr %s26, 6
          %s429 = sadd.s32 %s425, %s428
          %s430 = smul.addr %s429, 8
          %s431 = scalar_lea.hbm %s2, %s430
          %s432 = sshll.u32 %s421, 4
          %s433 = int_to_ptr.vmem [resolvable:$true] %s432
          %s434 = sshll.u32 %s431, 4
          %s435 = int_to_ptr.hbm [resolvable:$true] %s434
          %440 = dma.vmem_to_hbm [thread:$0]  %s433, 768, %s435, %s418, 128, 128, 8
        $region40: #{tpu_custom_call.1} parent=27 // pred_fallthru
          _
      $region28: #{tpu_custom_call.1} parent=5 // pred_fallthru
        _
      %p441 = scmp.le.s32.totalorder 2, %s17
      // Predicated region
      $region41: #{tpu_custom_call.1} parent=5 // pred_check
        %p442 = pneg %p441
      $region42: #{tpu_custom_call.1} parent=5 // pred_check_branch
        %444 = sbr.rel (%p442) target = $region44
      $region43: #{tpu_custom_call.1} parent=5 // pred_region
        %s445 = ssub.s32 %s17, 2
        // Predicated region
        $region45: #{tpu_custom_call.1} parent=43 // pred_check
          %p446 = pneg %p116
        $region46: #{tpu_custom_call.1} parent=43 // pred_check_branch
          %448 = sbr.rel (%p446) target = $region48
        $region47: #{tpu_custom_call.1} parent=43 // pred_region
          %s449 = sand.u32 %s101, 1
          %s450 = scalar_lea.sflag [#allocation4], %s449
          %s451 = sand.u32 %s101, 1
          %s452 = smul.addr %s451, 48
          %s453 = scalar_lea.vmem [#allocation7], %s452
          %455 = dma.done %s450, 768
        $region48: #{tpu_custom_call.1} parent=43 // pred_fallthru
          _
      $region44: #{tpu_custom_call.1} parent=5 // pred_fallthru
        _
    $region6: #{tpu_custom_call.1} parent=1 // loop_footer
      %s21 = sadd.s32 1, %s17
    $region7: #{tpu_custom_call.1} parent=1 // loop_footer_branch
      %16 = sbr.rel target = $region3
    $region8: #{tpu_custom_call.1} parent=1 // loop_exit
      _
    %456 = vsyncpa [#allocation3], 1
    %s457 = scalar_lea.sflag [#allocation3], 1
    %458 = vsyncpa %s457, 1
    %459 = vsyncpa [#allocation6], 1
    %s460 = scalar_lea.sflag [#allocation6], 1
    %461 = vsyncpa %s460, 1
    %462 = vsyncpa [#allocation4], 1
    %s463 = scalar_lea.sflag [#allocation4], 1
    %464 = vsyncpa %s463, 1

</llo_original>
